<compile_context>
chip_gen: v7x
topology: tpu7x:2x2x1
jax: 0.10.0
libtpu: 0.0.40
codegen_flags: <defaults>
</compile_context>

<pallas_src>
import jax
import jax.numpy as jnp
from jax import lax
from jax.experimental import pallas as pl
from jax.experimental.pallas import tpu as pltpu

_LANE = 128
_SUBLANE = 8
_STRIP_ROWS = 128        # rows folded per inner-loop step (16 f32 vregs live)
_MAX_TILE_ROWS = 2048    # (2048,128) f32 = 1 MiB / input / buffer.
                         # 2 inputs x 2-3 buffers = 4-6 MiB: comfortably inside
                         # the scoped-VMEM defaults of v5e (16 MiB), v6e (32)
                         # and v7x (32 of 64 MiB/TC).
_CLAMP_LO = 1e-05
_CLAMP_HI = 1.0 - 1e-05
_VMEM_LIMIT = 32 * 1024 * 1024


def _num_tensorcores() -> int:
    """Best-effort TensorCore count behind one JAX device (v7x / megacore -> 2).

    Returns 1 when nothing can be detected, which is always a safe (correct,
    just not core-sharded) choice.
    """
    probes = []
    try:
        probes.append(pltpu.get_tpu_info())
    except Exception:
        pass
    try:
        probes.append(jax.devices()[0])
    except Exception:
        pass
    for obj in probes:
        for name in ("num_cores", "core_count", "cores_per_chip", "num_tensorcores"):
            try:
                n = int(getattr(obj, name))
            except Exception:
                continue
            if 1 <= n <= 16:
                return n
    return 1


def _make_kernel(rows, tile_rows, steps_per_shard, needs_mask):
    num_full_strips = tile_rows // _STRIP_ROWS
    rem_rows = tile_rows - num_full_strips * _STRIP_ROWS   # multiple of 8
    # First *logical* block index whose row range reaches past `rows` (partial
    # last block and any fully-out-of-range clamped blocks of a short shard).
    oob_block_start = rows // tile_rows

    def kernel(w_ref, s_ref, out_ref):
        j = pl.program_id(0)                 # shard (core-parallel when >1)
        i = pl.program_id(1)                 # streaming step (reduction axis)
        block_idx = j * steps_per_shard + i  # logical (unclamped) block index

        @pl.when(i == 0)
        def _init():
            out_ref[...] = jnp.zeros_like(out_ref)

        def strip_sum(r0, nrows, masked):
            w = jnp.clip(w_ref[pl.ds(r0, nrows), :].astype(jnp.float32),
                         _CLAMP_LO, _CLAMP_HI)
            s = s_ref[pl.ds(r0, nrows), :].astype(jnp.float32)
            prod = jnp.log(w) * s
            if masked:
                rid = (block_idx * tile_rows + r0
                       + lax.broadcasted_iota(jnp.int32, (nrows, _LANE), 0))
                # Select (not arithmetic) so DMA garbage / NaN in OOB rows is
                # dropped, never propagated.
                prod = jnp.where(rid < rows, prod, 0.0)
            # (nrows,128) -> (8,128): vreg-aligned VPU adds only.
            return jnp.sum(
                prod.reshape(nrows // _SUBLANE, _SUBLANE, _LANE), axis=0)

        def fold_tile(masked):
            acc = jnp.zeros((_SUBLANE, _LANE), jnp.float32)
            if num_full_strips > 0:
                def body(k, a):
                    r0 = pl.multiple_of(k * _STRIP_ROWS, _STRIP_ROWS)
                    return a + strip_sum(r0, _STRIP_ROWS, masked)
                acc = lax.fori_loop(0, num_full_strips, body, acc, unroll=True)
            if rem_rows > 0:
                acc = acc + strip_sum(num_full_strips * _STRIP_ROWS, rem_rows,
                                      masked)
            return acc

        if not needs_mask:
            out_ref[...] += fold_tile(masked=False)
        else:
            is_oob = block_idx >= oob_block_start

            @pl.when(jnp.logical_not(is_oob))
            def _hot():                       # mask-free hot path
                out_ref[...] += fold_tile(masked=False)

            @pl.when(is_oob)
            def _edge():                      # partial / fully-OOB blocks only
                out_ref[...] += fold_tile(masked=True)

    return kernel


def _sum_log_prod(w2, s2, rows, num_shards_req):
    """sum(log(clamp(w)) * s) over a (rows, 128) slab via the Pallas kernel."""
    tile_rows = min(_MAX_TILE_ROWS, pl.cdiv(rows, _SUBLANE) * _SUBLANE)
    num_blocks = pl.cdiv(rows, tile_rows)
    num_shards = max(1, min(num_shards_req, num_blocks))
    steps_per_shard = pl.cdiv(num_blocks, num_shards)
    needs_clamp = num_shards * steps_per_shard != num_blocks
    needs_mask = num_shards * steps_per_shard * tile_rows != rows

    if needs_clamp:
        # Clamp the (at most num_shards-1) fully-out-of-range block indices of
        # the short shard onto the last real block; the in-kernel row mask
        # zeroes their contribution.
        def in_map(j, i):
            return (jnp.minimum(j * steps_per_shard + i, num_blocks - 1), 0)
    else:
        def in_map(j, i):
            return (j * steps_per_shard + i, 0)

    if num_shards > 1:
        # v7x / megacore: shard the leading axis across the TensorCores and
        # deepen the input pipeline (DMA head is relatively expensive at
        # ~3.2 TB/s per TC).
        in_spec = pl.BlockSpec((tile_rows, _LANE), in_map,
                               pipeline_mode=pl.Buffered(3))
        dim_sem = (pltpu.CORE_PARALLEL, pltpu.ARBITRARY)
    else:
        in_spec = pl.BlockSpec((tile_rows, _LANE), in_map)
        dim_sem = (pltpu.ARBITRARY, pltpu.ARBITRARY)

    out_spec = pl.BlockSpec((pl.Squeezed(), _SUBLANE, _LANE),
                            lambda j, i: (j, 0, 0))

    nbytes = lambda a: a.size * a.dtype.itemsize
    n_bulk = rows * _LANE
    cost = pl.CostEstimate(
        flops=2 * n_bulk,
        transcendentals=n_bulk,
        bytes_accessed=nbytes(w2) + nbytes(s2)
        + num_shards * _SUBLANE * _LANE * 4,
    )

    partials = pl.pallas_call(
        _make_kernel(rows, tile_rows, steps_per_shard, needs_mask),
        out_shape=jax.ShapeDtypeStruct((num_shards, _SUBLANE, _LANE),
                                       jnp.float32),
        grid_spec=pltpu.PrefetchScalarGridSpec(
            num_scalar_prefetch=0,
            grid=(num_shards, steps_per_shard),
            in_specs=[in_spec, in_spec],
            out_specs=out_spec,
        ),
        compiler_params=pltpu.CompilerParams(
            dimension_semantics=dim_sem,
            vmem_limit_bytes=_VMEM_LIMIT,
        ),
        cost_estimate=cost,
    )(w2, s2)

    # Tiny (num_shards, 8, 128) cross-lane reduce in plain JAX.
    return jnp.sum(partials)


def silhouette_loss(weights_sum, silhouette_canvases):
    """-mean(log(clamp(weights_sum, 1e-5, 1-1e-5)) * silhouette_canvases)."""
    assert weights_sum.shape == silhouette_canvases.shape
    n_elems = weights_sum.size

    # Keep native dtype (the kernel casts per-strip); flatten of a contiguous
    # array is metadata-only.
    w_flat = weights_sum.reshape(-1)
    s_flat = silhouette_canvases.reshape(-1)

    rows = n_elems // _LANE
    n_bulk = rows * _LANE

    total = jnp.float32(0.0)
    if rows > 0:
        if n_bulk == n_elems:
            w2 = w_flat.reshape(rows, _LANE)     # metadata-only reshape
            s2 = s_flat.reshape(rows, _LANE)
        else:
            # Unaligned tail: stream the 128-aligned bulk through the kernel
            # and fold the <128-element remainder in plain JAX below.  Unlike
            # the old concatenate/pad path this never rewrites padded copies
            # of both full tensors.
            w2 = w_flat[:n_bulk].reshape(rows, _LANE)
            s2 = s_flat[:n_bulk].reshape(rows, _LANE)

        num_cores = _num_tensorcores()
        if num_cores > 1:
            # CORE_PARALLEL sharding across TensorCores (v7x / megacore).
            # Fallback keeps us correct/compilable if this chip's lowering
            # rejects the core-parallel build (only works for the eager call
            # pattern used here).
            try:
                total = _sum_log_prod(w2, s2, rows, num_cores)
            except Exception:
                total = _sum_log_prod(w2, s2, rows, 1)
        else:
            total = _sum_log_prod(w2, s2, rows, 1)

    if n_bulk != n_elems:
        w_t = jnp.clip(w_flat[n_bulk:].astype(jnp.float32), _CLAMP_LO, _CLAMP_HI)
        s_t = s_flat[n_bulk:].astype(jnp.float32)
        total = total + jnp.sum(jnp.log(w_t) * s_t)

    return -(total / jnp.float32(n_elems))


if __name__ == "__main__":
    key = jax.random.PRNGKey(0)
    kw, ks = jax.random.split(key)

    B, C, H, W = 2, 4, 16, 16  # NCHW
    # weights_sum in [0, 1.2] to exercise the clamp on both sides.
    weights_sum = jax.random.uniform(kw, (B, C, H, W), jnp.float32, 0.0, 1.2)
    # "silhouette_canvases" parameter: deterministic binary-ish mask.
    silhouette_canvases = (
        jax.random.uniform(ks, (B, C, H, W), jnp.float32) > 0.5
    ).astype(jnp.float32)

    loss = jax.block_until_ready(silhouette_loss(weights_sum, silhouette_canvases))

    # Pure-JAX reference check.
    w_ref = jnp.clip(weights_sum, 1e-05, 1.0 - 1e-05)
    ref = -jnp.mean(jnp.log(w_ref) * silhouette_canvases)
    assert jnp.allclose(loss, ref, rtol=1e-5, atol=1e-6), (loss, ref)

    print("KERNEL_OK")
</pallas_src>

<mosaic_0001>
module attributes {stable_mosaic.version = 11 : i64} {
  func.func @kernel(%arg0: i32, %arg1: i32, %arg2: memref<16x128xf32, #tpu.memory_space<vmem>>, %arg3: memref<16x128xf32, #tpu.memory_space<vmem>>, %arg4: memref<1x8x128xf32, #tpu.memory_space<vmem>>) attributes {dimension_semantics = [#tpu.dimension_semantics<arbitrary>, #tpu.dimension_semantics<arbitrary>], iteration_bounds = array<i64: 1, 1>, scalar_prefetch = 0 : i64, scratch_operands = 0 : i64, tpu.core_type = #tpu.core_type<tc>, window_params = [{transform_indices = @transform_0, window_bounds = array<i64: 16, 128>}, {transform_indices = @transform_1, window_bounds = array<i64: 16, 128>}, {transform_indices = @transform_2, window_bounds = array<i64: 1, 8, 128>}]} {
    %c0_i32 = arith.constant 0 : i32
    %0 = arith.cmpi eq, %arg1, %c0_i32 : i32
    %1 = arith.extui %0 : i1 to i32
    %c0_i32_0 = arith.constant 0 : i32
    %2 = arith.cmpi ne, %1, %c0_i32_0 : i32
    scf.if %2 {
      %cst_13 = arith.constant 0.000000e+00 : f32
      %21 = vector.broadcast %cst_13 : f32 to vector<8x128xf32>
      %c0_14 = arith.constant 0 : index
      %c0_15 = arith.constant 0 : index
      %c0_16 = arith.constant 0 : index
      %22 = vector.load %arg4[%c0_14, %c0_15, %c0_16] : memref<1x8x128xf32, #tpu.memory_space<vmem>>, vector<1x8x128xf32>
      %23 = vector.shape_cast %22 : vector<1x8x128xf32> to vector<8x128xf32>
      %24 = vector.shape_cast %21 : vector<8x128xf32> to vector<1x8x128xf32>
      tpu.vector_store %arg4[%c0_14, %c0_15, %c0_16], %24 {strides = array<i32>} : memref<1x8x128xf32, #tpu.memory_space<vmem>>, vector<1x8x128xf32>,
    } else {
    }
    %c0 = arith.constant 0 : index
    %c0_1 = arith.constant 0 : index
    %c0_2 = arith.constant 0 : index
    %3 = vector.load %arg4[%c0, %c0_1, %c0_2] : memref<1x8x128xf32, #tpu.memory_space<vmem>>, vector<1x8x128xf32>
    %4 = vector.shape_cast %3 : vector<1x8x128xf32> to vector<8x128xf32>
    %cst = arith.constant 0.000000e+00 : f32
    %5 = vector.broadcast %cst : f32 to vector<8x128xf32>
    %c0_3 = arith.constant 0 : index
    %c0_4 = arith.constant 0 : index
    %6 = vector.load %arg2[%c0_3, %c0_4] : memref<16x128xf32, #tpu.memory_space<vmem>>, vector<16x128xf32>
    %cst_5 = arith.constant 9.99999974E-6 : f32
    %cst_6 = arith.constant 0.999989986 : f32
    %7 = vector.broadcast %cst_5 : f32 to vector<16x128xf32>
    %8 = arith.maximumf %7, %6 : vector<16x128xf32>
    %9 = vector.broadcast %cst_6 : f32 to vector<16x128xf32>
    %10 = arith.minimumf %9, %8 : vector<16x128xf32>
    %c0_7 = arith.constant 0 : index
    %c0_8 = arith.constant 0 : index
    %11 = vector.load %arg3[%c0_7, %c0_8] : memref<16x128xf32, #tpu.memory_space<vmem>>, vector<16x128xf32>
    %12 = math.log %10 : vector<16x128xf32>
    %13 = arith.mulf %12, %11 : vector<16x128xf32>
    %14 = vector.shape_cast %13 : vector<16x128xf32> to vector<2x8x128xf32>
    %cst_9 = arith.constant dense<0.000000e+00> : vector<8x128xf32>
    %15 = vector.multi_reduction <add>, %14, %cst_9 [0] : vector<2x8x128xf32> to vector<8x128xf32>
    %16 = arith.addf %5, %15 : vector<8x128xf32>
    %17 = arith.addf %4, %16 : vector<8x128xf32>
    %c0_10 = arith.constant 0 : index
    %c0_11 = arith.constant 0 : index
    %c0_12 = arith.constant 0 : index
    %18 = vector.load %arg4[%c0_10, %c0_11, %c0_12] : memref<1x8x128xf32, #tpu.memory_space<vmem>>, vector<1x8x128xf32>
    %19 = vector.shape_cast %18 : vector<1x8x128xf32> to vector<8x128xf32>
    %20 = vector.shape_cast %17 : vector<8x128xf32> to vector<1x8x128xf32>
    tpu.vector_store %arg4[%c0_10, %c0_11, %c0_12], %20 {strides = array<i32>} : memref<1x8x128xf32, #tpu.memory_space<vmem>>, vector<1x8x128xf32>,
    return
  }
  func.func @transform_0(%arg0: i32, %arg1: i32) -> (i32, i32) {
    %c1_i32 = arith.constant 1 : i32
    %0 = arith.muli %arg0, %c1_i32 : i32
    %1 = arith.addi %0, %arg1 : i32
    %c0_i32 = arith.constant 0 : i32
    %c0_i32_0 = arith.constant 0 : i32
    return %1, %c0_i32 : i32, i32
  }
  func.func @transform_1(%arg0: i32, %arg1: i32) -> (i32, i32) {
    %c1_i32 = arith.constant 1 : i32
    %0 = arith.muli %arg0, %c1_i32 : i32
    %1 = arith.addi %0, %arg1 : i32
    %c0_i32 = arith.constant 0 : i32
    %c0_i32_0 = arith.constant 0 : i32
    return %1, %c0_i32 : i32, i32
  }
  func.func @transform_2(%arg0: i32, %arg1: i32) -> (i32, i32, i32) {
    %c0_i32 = arith.constant 0 : i32
    %c0_i32_0 = arith.constant 0 : i32
    %c0_i32_1 = arith.constant 0 : i32
    return %arg0, %c0_i32, %c0_i32_0 : i32, i32, i32
  }
}

</mosaic_0001>

<llo_original>
// kernel: tpu_custom_call.1
$region0: #{tpu_custom_call.1}
  #allocation0 [shape = 'u32[]', space=smem, size = 0x4, offset = 0x4, fixed_abs, tag = 'smem constant byte address 0x4 - core index']
  #allocation1 [shape = 'u32[144,128]{1,0:T(1,128)}', space=vmem, size = 0x12000, scoped, tag = 'internal scratch']
  %s0 = inlined_call_operand.hbm [shape: f32[16,128], index: 0, kind: input, shape index: {}]
  %s1 = inlined_call_operand.hbm [shape: f32[16,128], index: 1, kind: input, shape index: {}]
  %s2 = inlined_call_operand.hbm [shape: f32[1,8,128], index: 2, kind: output, shape index: {}]
  %s3 = sld [smem:[#allocation0]]
  $region30: #{tpu_custom_call.1} parent=0
    _
  %s5 = ssub.s32 1, %s3
  %s6 = scalar_select 0, %s5, %s3
  $region1: #{tpu_custom_call.1} parent=0
    #allocation2 [shape = 'u8[8192]{0}', space=vmem, size = 0x2000, scoped, tag = 'input window, operand 0, single buffered']
    #allocation3 [shape = 's32[1]{0}', space=sflag, size = 0x4, scoped, tag = 'scoped memory for tpu_custom_call.1']
    #allocation4 [shape = 's32[1]{0}', space=sflag, size = 0x4, scoped, tag = 'scoped memory for tpu_custom_call.1']
    #allocation5 [shape = 'u8[8192]{0}', space=vmem, size = 0x2000, scoped, tag = 'input window, operand 1, single buffered']
    #allocation6 [shape = 's32[1]{0}', space=sflag, size = 0x4, scoped, tag = 'scoped memory for tpu_custom_call.1']
    #allocation7 [shape = 'u8[4096]{0}', space=vmem, size = 0x1000, scoped, tag = 'output window, operand 0, single buffered']
    %7 = vsyncpa [#allocation3], 0
    %8 = vsyncpa [#allocation6], 0
    %9 = vsyncpa [#allocation4], 0
    // Predicated region
    $region2: #{tpu_custom_call.1} parent=1 // pred_check
      _
    $region3: #{tpu_custom_call.1} parent=1 // pred_check_branch
      %11 = sbr.rel (0) target = $region5
    $region4: #{tpu_custom_call.1} parent=1 // pred_region
      %s12 = sadd.s32 0, 0
      %s13 = smul.u32 2, %s12
      %s15 = ssub.s32 256, 256
      %16 = vsyncadd [#allocation3], %s15
      %s17 = smul.addr %s13, 128
      %s18 = scalar_lea.hbm %s0, %s17
      %s19 = sshll.u32 [#allocation2], 4
      %s20 = int_to_ptr.vmem [resolvable:$true] %s19
      %25 = dma.hbm_to_vmem [thread:$0]  %s18, 256, %s20, [#allocation3], 128, 128, 8
    $region5: #{tpu_custom_call.1} parent=1 // pred_fallthru
      _
    // Predicated region
    $region6: #{tpu_custom_call.1} parent=1 // pred_check
      _
    $region7: #{tpu_custom_call.1} parent=1 // pred_check_branch
      %27 = sbr.rel (0) target = $region9
    $region8: #{tpu_custom_call.1} parent=1 // pred_region
      %s28 = sadd.s32 0, 0
      %s29 = smul.u32 2, %s28
      %s31 = ssub.s32 256, 256
      %32 = vsyncadd [#allocation6], %s31
      %s33 = smul.addr %s29, 128
      %s34 = scalar_lea.hbm %s1, %s33
      %s35 = sshll.u32 [#allocation5], 4
      %s36 = int_to_ptr.vmem [resolvable:$true] %s35
      %41 = dma.hbm_to_vmem [thread:$0]  %s34, 256, %s36, [#allocation6], 128, 128, 8
    $region9: #{tpu_custom_call.1} parent=1 // pred_fallthru
      _
    // Predicated region
    $region10: #{tpu_custom_call.1} parent=1 // pred_check
      _
    $region11: #{tpu_custom_call.1} parent=1 // pred_check_branch
      %43 = sbr.rel (0) target = $region13
    $region12: #{tpu_custom_call.1} parent=1 // pred_region
      %44 = dma.done [#allocation3], 256
    $region13: #{tpu_custom_call.1} parent=1 // pred_fallthru
      _
    // Predicated region
    $region14: #{tpu_custom_call.1} parent=1 // pred_check
      _
    $region15: #{tpu_custom_call.1} parent=1 // pred_check_branch
      %46 = sbr.rel (0) target = $region17
    $region16: #{tpu_custom_call.1} parent=1 // pred_region
      %47 = dma.done [#allocation6], 256
    $region17: #{tpu_custom_call.1} parent=1 // pred_fallthru
      _
    %s48 = sadd.s32 0, 0
    %s49 = smul.u32 2, %s48
    %s50 = sadd.s32 0, 0
    %s51 = smul.u32 2, %s50
    %p52 = scmp.eq.s32.totalorder 0, 0
    // Predicated region
    $region18: #{tpu_custom_call.1} parent=1 // pred_check
      %p53 = pneg %p52
    $region19: #{tpu_custom_call.1} parent=1 // pred_check_branch
      %55 = sbr.rel (%p53) target = $region21
    $region20: #{tpu_custom_call.1} parent=1 // pred_region
      %56 = vst [vmem:[#allocation7] sm:$0xff] 0.0
    $region21: #{tpu_custom_call.1} parent=1 // pred_fallthru
      _
    %v57 = vld [vmem:[#allocation7] sm:$0xff]
    %v58 = vld [vmem:[#allocation2] sm:$0xff]
    %v59 = vld [vmem:[#allocation2 + $0x8] sm:$0xff]
    %v60 = vmax.f32 %v58, 1e-05
    %v61 = vmax.f32 %v59, 1e-05
    %v62 = vmin.f32 %v60, 0.99999
    %v63 = vmin.f32 %v61, 0.99999
    %v64 = vld [vmem:[#allocation5] sm:$0xff]
    %v65 = vld [vmem:[#allocation5 + $0x8] sm:$0xff]
    %v66 = vlog2.pop %v62
    %v67 = vmul.f32 %v66, 0.6931472
    %v68 = vlog2.pop %v63
    %v69 = vmul.f32 %v68, 0.6931472
    %v70 = vmul.f32 %v67, %v64
    %v71 = vmul.f32 %v69, %v65
    %v72 = vadd.f32 %v70, %v71
    %v73 = vadd.f32 %v72, 0.0
    %v74 = vadd.f32 %v57, %v73
    %75 = vst [vmem:[#allocation7] sm:$0xff] %v74
    // Predicated region
    $region22: #{tpu_custom_call.1} parent=1 // pred_check
      _
    $region23: #{tpu_custom_call.1} parent=1 // pred_check_branch
      %77 = sbr.rel (0) target = $region25
    $region24: #{tpu_custom_call.1} parent=1 // pred_region
      %s79 = ssub.s32 128, 128
      %80 = vsyncadd [#allocation4], %s79
      %s82 = sshll.u32 [#allocation7], 4
      %s83 = int_to_ptr.vmem [resolvable:$true] %s82
      %85 = dma.vmem_to_hbm [thread:$0]  %s83, 128, %s2, [#allocation4]
    $region25: #{tpu_custom_call.1} parent=1 // pred_fallthru
      _
    // Predicated region
    $region26: #{tpu_custom_call.1} parent=1 // pred_check
      _
    $region27: #{tpu_custom_call.1} parent=1 // pred_check_branch
      %87 = sbr.rel (0) target = $region29
    $region28: #{tpu_custom_call.1} parent=1 // pred_region
      %88 = dma.done [#allocation4], 128
    $region29: #{tpu_custom_call.1} parent=1 // pred_fallthru
      _
    %89 = vsyncpa [#allocation3], 1
    %90 = vsyncpa [#allocation6], 1
    %91 = vsyncpa [#allocation4], 1

</llo_original>
